<compile_context>
chip_gen: v6e
topology: v6e:2x2x1
jax: 0.10.0
libtpu: 0.0.40
codegen_flags: <defaults>
</compile_context>

<pallas_src>
import functools

import jax
import jax.numpy as jnp
import numpy as np
from jax import lax
from jax.experimental import pallas as pl
from jax.experimental.pallas import tpu as pltpu


# ------------------------------ Fused kernel ------------------------------
def _action_fused_kernel(width, tap_ref, mask_ref, x_ref, o_ref):
    # tap_ref : SMEM (27,) f32   conv taps already scaled by 1/c, k = dt*9 + dh*3 + dw
    # mask_ref: VMEM (9, hw) f32 spatial zero-padding validity masks, s = dh*3 + dw
    # x_ref   : VMEM (B, t, c, hw)  one group of samples, spatial dims flattened
    # o_ref   : VMEM (B, t, c, hw)
    bsz, t, _c, hw = x_ref.shape

    xv = x_ref[...]                                        # single read of x
    # Channel sum in f32 (the 1/c mean scale is folded into the taps).
    m = jnp.sum(xv, axis=2, dtype=jnp.float32)             # (B, t, hw)

    # 3x3 spatial taps: lane-roll the mean map (XLU), zero the wrap-around with the
    # precomputed masks, and fold each view straight into the 3 per-dt accumulators.
    acc = [None, None, None]
    for dh in range(3):
        for dw in range(3):
            s = dh * 3 + dw
            d = (dh - 1) * width + (dw - 1)                # flattened source offset
            if d == 0:
                v = m
            else:
                v = pltpu.roll(m, shift=(-d) % hw, axis=2)     # v[..,p] = m[..,(p+d)%hw]
                v = v * mask_ref[s][None, None, :]
            for dt in range(3):
                term = tap_ref[dt * 9 + s] * v
                acc[dt] = term if acc[dt] is None else acc[dt] + term

    # Temporal combination (zero padding along t): y[tt] = a0[tt-1] + a1[tt] + a2[tt+1].
    # These maps are c-times smaller than x, so the small sublane concats are negligible
    # next to the HBM-bound x traffic.
    zrow = jnp.zeros((bsz, 1, hw), jnp.float32)
    y = acc[1]
    y = y + jnp.concatenate([zrow, acc[0][:, :-1, :]], axis=1)
    y = y + jnp.concatenate([acc[2][:, 1:, :], zrow], axis=1)

    # Gate: out = x * sigmoid(y) + x == x * (1 + sigmoid(y)).
    g = 1.0 + jax.nn.sigmoid(y)                            # (B, t, hw), EUP
    o_ref[...] = xv * g[:, :, None, :].astype(xv.dtype)    # broadcast over channels


# ------------------------------ Host helpers ------------------------------
def _spatial_masks(h, w):
    """(9, h*w) f32: validity of the (dh,dw) shifted source for every flattened pixel."""
    hw = h * w
    pos = np.arange(hw)
    row, col = pos // w, pos % w
    masks = np.zeros((9, hw), np.float32)
    for dh in range(3):
        for dw in range(3):
            rr, cc = row + dh - 1, col + dw - 1
            valid = (rr >= 0) & (rr < h) & (cc >= 0) & (cc < w)
            masks[dh * 3 + dw] = valid.astype(np.float32)
    return masks


def _pick_samples_per_block(n, per_sample_bytes, target_bytes=2 << 20):
    """Largest divisor of n keeping the block <= target and >=2 grid steps when n >= 2."""
    best = 1
    for b in range(1, n + 1):
        if n % b:
            continue
        if b * per_sample_bytes > target_bytes:
            break
        if b > 1 and n // b < 2:
            continue
        best = b
    return best


# -------------------------------- Wrapper --------------------------------
def action_forward(x, conv3d_weight):
    """x: (n, t, c, h, w); conv3d_weight: (1, 1, 3, 3, 3) f32.  Returns x.dtype."""
    n, t, c, h, w = x.shape
    hw = h * w

    # Lane-dense view of x: merge the trailing spatial dims (free contiguous reshape).
    x_flat = x.reshape(n, t, c, hw)
    # Fold the 1/c channel-mean scale into the taps (k = dt*9 + dh*3 + dw, OIDHW order).
    w27 = (conv3d_weight.reshape(27) / float(c)).astype(jnp.float32)
    masks = jnp.asarray(_spatial_masks(h, w))

    per_sample_bytes = t * c * hw * x.dtype.itemsize
    bsz = _pick_samples_per_block(n, per_sample_bytes)
    block_bytes = bsz * per_sample_bytes
    # 2 blocks (in+out) x 2 (double buffering) + masks + f32 map temporaries + headroom.
    vmem_limit = int(min(100 << 20, max(32 << 20, 6 * block_bytes + (8 << 20))))

    kernel = functools.partial(_action_fused_kernel, w)

    out_flat = pl.pallas_call(
        kernel,
        out_shape=jax.ShapeDtypeStruct((n, t, c, hw), x.dtype),
        grid=(n // bsz,),
        in_specs=[
            pl.BlockSpec(memory_space=pltpu.MemorySpace.SMEM),        # w27 (27,)
            pl.BlockSpec((9, hw), lambda i: (0, 0)),                  # spatial masks
            pl.BlockSpec((bsz, t, c, hw), lambda i: (i, 0, 0, 0)),    # x sample group
        ],
        out_specs=pl.BlockSpec((bsz, t, c, hw), lambda i: (i, 0, 0, 0)),
        compiler_params=pltpu.CompilerParams(
            dimension_semantics=("parallel",),
            vmem_limit_bytes=vmem_limit,
        ),
    )(w27, masks, x_flat)

    return out_flat.reshape(n, t, c, h, w)


# --------------------------- Reference (pure JAX) ---------------------------
def action_forward_ref(x, conv3d_weight):
    m = x.astype(jnp.float32).mean(axis=2)                          # (n, t, h, w)
    y = lax.conv_general_dilated(
        m[:, None], conv3d_weight.astype(jnp.float32),
        window_strides=(1, 1, 1),
        padding=[(1, 1), (1, 1), (1, 1)],
        dimension_numbers=("NCDHW", "OIDHW", "NCDHW"),
    )                                                               # (n, 1, t, h, w)
    a = jax.nn.sigmoid(y[:, 0])                                     # (n, t, h, w)
    return x * a[:, :, None].astype(x.dtype) + x


if __name__ == "__main__":
    key = jax.random.PRNGKey(0)

    # action_p1_conv1 weight: Conv3d(1, 1, 3x3x3), PyTorch default kaiming-uniform init.
    fan_in = 1 * 3 * 3 * 3
    bound = 1.0 / np.sqrt(fan_in)
    key, kw = jax.random.split(key)
    conv3d_weight = jax.random.uniform(
        kw, (1, 1, 3, 3, 3), dtype=jnp.float32, minval=-bound, maxval=bound
    )
    # TODO(synk): action_shift / p2 / p3 branches & BatchNorm params are unused by this
    # forward() and therefore not instantiated.

    # Two small configs: (a) one sample per block, (b) multi-sample blocks (B=4) with a
    # non-power-of-two width.  Both consistent with the module (n_segment=3, c=16).
    for (n, t, c, h, w) in [(2, 3, 16, 16, 16), (8, 3, 16, 16, 24)]:
        key, kx = jax.random.split(key)
        x = jax.random.normal(kx, (n, t, c, h, w), dtype=jnp.float32)

        out = jax.block_until_ready(action_forward(x, conv3d_weight))
        ref = jax.block_until_ready(action_forward_ref(x, conv3d_weight))
        np.testing.assert_allclose(np.asarray(out), np.asarray(ref), rtol=1e-5, atol=1e-5)

    print("KERNEL_OK")
</pallas_src>

<mosaic_0001>
module attributes {stable_mosaic.version = 11 : i64} {
  func.func @_action_fused_kernel(%arg0: i32, %arg1: memref<27xf32, #tpu.memory_space<smem>>, %arg2: memref<9x256xf32, #tpu.memory_space<vmem>>, %arg3: memref<1x3x16x256xf32, #tpu.memory_space<vmem>>, %arg4: memref<1x3x16x256xf32, #tpu.memory_space<vmem>>) attributes {dimension_semantics = [#tpu.dimension_semantics<parallel>], iteration_bounds = array<i64: 2>, scalar_prefetch = 0 : i64, scratch_operands = 0 : i64, tpu.core_type = #tpu.core_type<tc>, window_params = [{transform_indices = @transform_0, window_bounds = array<i64: 27>}, {pipeline_mode = #tpu.pipeline_mode<synchronous>, transform_indices = @transform_1, window_bounds = array<i64: 9, 256>}, {transform_indices = @transform_2, window_bounds = array<i64: 1, 3, 16, 256>}, {transform_indices = @transform_3, window_bounds = array<i64: 1, 3, 16, 256>}]} {
    %c0 = arith.constant 0 : index
    %c0_0 = arith.constant 0 : index
    %c0_1 = arith.constant 0 : index
    %c0_2 = arith.constant 0 : index
    %0 = vector.load %arg3[%c0, %c0_0, %c0_1, %c0_2] : memref<1x3x16x256xf32, #tpu.memory_space<vmem>>, vector<1x3x16x256xf32>
    %cst = arith.constant dense<0.000000e+00> : vector<1x3x256xf32>
    %1 = vector.multi_reduction <add>, %0, %cst [2] : vector<1x3x16x256xf32> to vector<1x3x256xf32>
    %c17_i32 = arith.constant 17 : i32
    %2 = tpu.dynamic_rotate %1 by %c17_i32 dim 2 : vector<1x3x256xf32>, i32 -> vector<1x3x256xf32>
    %c0_3 = arith.constant 0 : index
    %c0_4 = arith.constant 0 : index
    %3 = vector.load %arg2[%c0_3, %c0_4] : memref<9x256xf32, #tpu.memory_space<vmem>>, vector<1x256xf32>
    %4 = vector.shape_cast %3 : vector<1x256xf32> to vector<256xf32>
    %5 = vector.shape_cast %4 : vector<256xf32> to vector<1x1x256xf32>
    %6 = vector.broadcast %5 : vector<1x1x256xf32> to vector<1x3x256xf32>
    %7 = arith.mulf %2, %6 : vector<1x3x256xf32>
    %c0_5 = arith.constant 0 : index
    %8 = memref.load %arg1[%c0_5] : memref<27xf32, #tpu.memory_space<smem>>
    %9 = vector.broadcast %8 : f32 to vector<1x3x256xf32>
    %10 = arith.mulf %9, %7 : vector<1x3x256xf32>
    %c9 = arith.constant 9 : index
    %11 = memref.load %arg1[%c9] : memref<27xf32, #tpu.memory_space<smem>>
    %12 = vector.broadcast %11 : f32 to vector<1x3x256xf32>
    %13 = arith.mulf %12, %7 : vector<1x3x256xf32>
    %c18 = arith.constant 18 : index
    %14 = memref.load %arg1[%c18] : memref<27xf32, #tpu.memory_space<smem>>
    %15 = vector.broadcast %14 : f32 to vector<1x3x256xf32>
    %16 = arith.mulf %15, %7 : vector<1x3x256xf32>
    %c16_i32 = arith.constant 16 : i32
    %17 = tpu.dynamic_rotate %1 by %c16_i32 dim 2 : vector<1x3x256xf32>, i32 -> vector<1x3x256xf32>
    %c1 = arith.constant 1 : index
    %c0_6 = arith.constant 0 : index
    %18 = vector.load %arg2[%c1, %c0_6] : memref<9x256xf32, #tpu.memory_space<vmem>>, vector<1x256xf32>
    %19 = vector.shape_cast %18 : vector<1x256xf32> to vector<256xf32>
    %20 = vector.shape_cast %19 : vector<256xf32> to vector<1x1x256xf32>
    %21 = vector.broadcast %20 : vector<1x1x256xf32> to vector<1x3x256xf32>
    %22 = arith.mulf %17, %21 : vector<1x3x256xf32>
    %c1_7 = arith.constant 1 : index
    %23 = memref.load %arg1[%c1_7] : memref<27xf32, #tpu.memory_space<smem>>
    %24 = vector.broadcast %23 : f32 to vector<1x3x256xf32>
    %25 = arith.mulf %24, %22 : vector<1x3x256xf32>
    %26 = arith.addf %10, %25 : vector<1x3x256xf32>
    %c10 = arith.constant 10 : index
    %27 = memref.load %arg1[%c10] : memref<27xf32, #tpu.memory_space<smem>>
    %28 = vector.broadcast %27 : f32 to vector<1x3x256xf32>
    %29 = arith.mulf %28, %22 : vector<1x3x256xf32>
    %30 = arith.addf %13, %29 : vector<1x3x256xf32>
    %c19 = arith.constant 19 : index
    %31 = memref.load %arg1[%c19] : memref<27xf32, #tpu.memory_space<smem>>
    %32 = vector.broadcast %31 : f32 to vector<1x3x256xf32>
    %33 = arith.mulf %32, %22 : vector<1x3x256xf32>
    %34 = arith.addf %16, %33 : vector<1x3x256xf32>
    %c15_i32 = arith.constant 15 : i32
    %35 = tpu.dynamic_rotate %1 by %c15_i32 dim 2 : vector<1x3x256xf32>, i32 -> vector<1x3x256xf32>
    %c2 = arith.constant 2 : index
    %c0_8 = arith.constant 0 : index
    %36 = vector.load %arg2[%c2, %c0_8] : memref<9x256xf32, #tpu.memory_space<vmem>>, vector<1x256xf32>
    %37 = vector.shape_cast %36 : vector<1x256xf32> to vector<256xf32>
    %38 = vector.shape_cast %37 : vector<256xf32> to vector<1x1x256xf32>
    %39 = vector.broadcast %38 : vector<1x1x256xf32> to vector<1x3x256xf32>
    %40 = arith.mulf %35, %39 : vector<1x3x256xf32>
    %c2_9 = arith.constant 2 : index
    %41 = memref.load %arg1[%c2_9] : memref<27xf32, #tpu.memory_space<smem>>
    %42 = vector.broadcast %41 : f32 to vector<1x3x256xf32>
    %43 = arith.mulf %42, %40 : vector<1x3x256xf32>
    %44 = arith.addf %26, %43 : vector<1x3x256xf32>
    %c11 = arith.constant 11 : index
    %45 = memref.load %arg1[%c11] : memref<27xf32, #tpu.memory_space<smem>>
    %46 = vector.broadcast %45 : f32 to vector<1x3x256xf32>
    %47 = arith.mulf %46, %40 : vector<1x3x256xf32>
    %48 = arith.addf %30, %47 : vector<1x3x256xf32>
    %c20 = arith.constant 20 : index
    %49 = memref.load %arg1[%c20] : memref<27xf32, #tpu.memory_space<smem>>
    %50 = vector.broadcast %49 : f32 to vector<1x3x256xf32>
    %51 = arith.mulf %50, %40 : vector<1x3x256xf32>
    %52 = arith.addf %34, %51 : vector<1x3x256xf32>
    %c1_i32 = arith.constant 1 : i32
    %53 = tpu.dynamic_rotate %1 by %c1_i32 dim 2 : vector<1x3x256xf32>, i32 -> vector<1x3x256xf32>
    %c3 = arith.constant 3 : index
    %c0_10 = arith.constant 0 : index
    %54 = vector.load %arg2[%c3, %c0_10] : memref<9x256xf32, #tpu.memory_space<vmem>>, vector<1x256xf32>
    %55 = vector.shape_cast %54 : vector<1x256xf32> to vector<256xf32>
    %56 = vector.shape_cast %55 : vector<256xf32> to vector<1x1x256xf32>
    %57 = vector.broadcast %56 : vector<1x1x256xf32> to vector<1x3x256xf32>
    %58 = arith.mulf %53, %57 : vector<1x3x256xf32>
    %c3_11 = arith.constant 3 : index
    %59 = memref.load %arg1[%c3_11] : memref<27xf32, #tpu.memory_space<smem>>
    %60 = vector.broadcast %59 : f32 to vector<1x3x256xf32>
    %61 = arith.mulf %60, %58 : vector<1x3x256xf32>
    %62 = arith.addf %44, %61 : vector<1x3x256xf32>
    %c12 = arith.constant 12 : index
    %63 = memref.load %arg1[%c12] : memref<27xf32, #tpu.memory_space<smem>>
    %64 = vector.broadcast %63 : f32 to vector<1x3x256xf32>
    %65 = arith.mulf %64, %58 : vector<1x3x256xf32>
    %66 = arith.addf %48, %65 : vector<1x3x256xf32>
    %c21 = arith.constant 21 : index
    %67 = memref.load %arg1[%c21] : memref<27xf32, #tpu.memory_space<smem>>
    %68 = vector.broadcast %67 : f32 to vector<1x3x256xf32>
    %69 = arith.mulf %68, %58 : vector<1x3x256xf32>
    %70 = arith.addf %52, %69 : vector<1x3x256xf32>
    %c4 = arith.constant 4 : index
    %71 = memref.load %arg1[%c4] : memref<27xf32, #tpu.memory_space<smem>>
    %72 = vector.broadcast %71 : f32 to vector<1x3x256xf32>
    %73 = arith.mulf %72, %1 : vector<1x3x256xf32>
    %74 = arith.addf %62, %73 : vector<1x3x256xf32>
    %c13 = arith.constant 13 : index
    %75 = memref.load %arg1[%c13] : memref<27xf32, #tpu.memory_space<smem>>
    %76 = vector.broadcast %75 : f32 to vector<1x3x256xf32>
    %77 = arith.mulf %76, %1 : vector<1x3x256xf32>
    %78 = arith.addf %66, %77 : vector<1x3x256xf32>
    %c22 = arith.constant 22 : index
    %79 = memref.load %arg1[%c22] : memref<27xf32, #tpu.memory_space<smem>>
    %80 = vector.broadcast %79 : f32 to vector<1x3x256xf32>
    %81 = arith.mulf %80, %1 : vector<1x3x256xf32>
    %82 = arith.addf %70, %81 : vector<1x3x256xf32>
    %c255_i32 = arith.constant 255 : i32
    %83 = tpu.dynamic_rotate %1 by %c255_i32 dim 2 : vector<1x3x256xf32>, i32 -> vector<1x3x256xf32>
    %c5 = arith.constant 5 : index
    %c0_12 = arith.constant 0 : index
    %84 = vector.load %arg2[%c5, %c0_12] : memref<9x256xf32, #tpu.memory_space<vmem>>, vector<1x256xf32>
    %85 = vector.shape_cast %84 : vector<1x256xf32> to vector<256xf32>
    %86 = vector.shape_cast %85 : vector<256xf32> to vector<1x1x256xf32>
    %87 = vector.broadcast %86 : vector<1x1x256xf32> to vector<1x3x256xf32>
    %88 = arith.mulf %83, %87 : vector<1x3x256xf32>
    %c5_13 = arith.constant 5 : index
    %89 = memref.load %arg1[%c5_13] : memref<27xf32, #tpu.memory_space<smem>>
    %90 = vector.broadcast %89 : f32 to vector<1x3x256xf32>
    %91 = arith.mulf %90, %88 : vector<1x3x256xf32>
    %92 = arith.addf %74, %91 : vector<1x3x256xf32>
    %c14 = arith.constant 14 : index
    %93 = memref.load %arg1[%c14] : memref<27xf32, #tpu.memory_space<smem>>
    %94 = vector.broadcast %93 : f32 to vector<1x3x256xf32>
    %95 = arith.mulf %94, %88 : vector<1x3x256xf32>
    %96 = arith.addf %78, %95 : vector<1x3x256xf32>
    %c23 = arith.constant 23 : index
    %97 = memref.load %arg1[%c23] : memref<27xf32, #tpu.memory_space<smem>>
    %98 = vector.broadcast %97 : f32 to vector<1x3x256xf32>
    %99 = arith.mulf %98, %88 : vector<1x3x256xf32>
    %100 = arith.addf %82, %99 : vector<1x3x256xf32>
    %c241_i32 = arith.constant 241 : i32
    %101 = tpu.dynamic_rotate %1 by %c241_i32 dim 2 : vector<1x3x256xf32>, i32 -> vector<1x3x256xf32>
    %c6 = arith.constant 6 : index
    %c0_14 = arith.constant 0 : index
    %102 = vector.load %arg2[%c6, %c0_14] : memref<9x256xf32, #tpu.memory_space<vmem>>, vector<1x256xf32>
    %103 = vector.shape_cast %102 : vector<1x256xf32> to vector<256xf32>
    %104 = vector.shape_cast %103 : vector<256xf32> to vector<1x1x256xf32>
    %105 = vector.broadcast %104 : vector<1x1x256xf32> to vector<1x3x256xf32>
    %106 = arith.mulf %101, %105 : vector<1x3x256xf32>
    %c6_15 = arith.constant 6 : index
    %107 = memref.load %arg1[%c6_15] : memref<27xf32, #tpu.memory_space<smem>>
    %108 = vector.broadcast %107 : f32 to vector<1x3x256xf32>
    %109 = arith.mulf %108, %106 : vector<1x3x256xf32>
    %110 = arith.addf %92, %109 : vector<1x3x256xf32>
    %c15 = arith.constant 15 : index
    %111 = memref.load %arg1[%c15] : memref<27xf32, #tpu.memory_space<smem>>
    %112 = vector.broadcast %111 : f32 to vector<1x3x256xf32>
    %113 = arith.mulf %112, %106 : vector<1x3x256xf32>
    %114 = arith.addf %96, %113 : vector<1x3x256xf32>
    %c24 = arith.constant 24 : index
    %115 = memref.load %arg1[%c24] : memref<27xf32, #tpu.memory_space<smem>>
    %116 = vector.broadcast %115 : f32 to vector<1x3x256xf32>
    %117 = arith.mulf %116, %106 : vector<1x3x256xf32>
    %118 = arith.addf %100, %117 : vector<1x3x256xf32>
    %c240_i32 = arith.constant 240 : i32
    %119 = tpu.dynamic_rotate %1 by %c240_i32 dim 2 : vector<1x3x256xf32>, i32 -> vector<1x3x256xf32>
    %c7 = arith.constant 7 : index
    %c0_16 = arith.constant 0 : index
    %120 = vector.load %arg2[%c7, %c0_16] : memref<9x256xf32, #tpu.memory_space<vmem>>, vector<1x256xf32>
    %121 = vector.shape_cast %120 : vector<1x256xf32> to vector<256xf32>
    %122 = vector.shape_cast %121 : vector<256xf32> to vector<1x1x256xf32>
    %123 = vector.broadcast %122 : vector<1x1x256xf32> to vector<1x3x256xf32>
    %124 = arith.mulf %119, %123 : vector<1x3x256xf32>
    %c7_17 = arith.constant 7 : index
    %125 = memref.load %arg1[%c7_17] : memref<27xf32, #tpu.memory_space<smem>>
    %126 = vector.broadcast %125 : f32 to vector<1x3x256xf32>
    %127 = arith.mulf %126, %124 : vector<1x3x256xf32>
    %128 = arith.addf %110, %127 : vector<1x3x256xf32>
    %c16 = arith.constant 16 : index
    %129 = memref.load %arg1[%c16] : memref<27xf32, #tpu.memory_space<smem>>
    %130 = vector.broadcast %129 : f32 to vector<1x3x256xf32>
    %131 = arith.mulf %130, %124 : vector<1x3x256xf32>
    %132 = arith.addf %114, %131 : vector<1x3x256xf32>
    %c25 = arith.constant 25 : index
    %133 = memref.load %arg1[%c25] : memref<27xf32, #tpu.memory_space<smem>>
    %134 = vector.broadcast %133 : f32 to vector<1x3x256xf32>
    %135 = arith.mulf %134, %124 : vector<1x3x256xf32>
    %136 = arith.addf %118, %135 : vector<1x3x256xf32>
    %c239_i32 = arith.constant 239 : i32
    %137 = tpu.dynamic_rotate %1 by %c239_i32 dim 2 : vector<1x3x256xf32>, i32 -> vector<1x3x256xf32>
    %c8 = arith.constant 8 : index
    %c0_18 = arith.constant 0 : index
    %138 = vector.load %arg2[%c8, %c0_18] : memref<9x256xf32, #tpu.memory_space<vmem>>, vector<1x256xf32>
    %139 = vector.shape_cast %138 : vector<1x256xf32> to vector<256xf32>
    %140 = vector.shape_cast %139 : vector<256xf32> to vector<1x1x256xf32>
    %141 = vector.broadcast %140 : vector<1x1x256xf32> to vector<1x3x256xf32>
    %142 = arith.mulf %137, %141 : vector<1x3x256xf32>
    %c8_19 = arith.constant 8 : index
    %143 = memref.load %arg1[%c8_19] : memref<27xf32, #tpu.memory_space<smem>>
    %144 = vector.broadcast %143 : f32 to vector<1x3x256xf32>
    %145 = arith.mulf %144, %142 : vector<1x3x256xf32>
    %146 = arith.addf %128, %145 : vector<1x3x256xf32>
    %c17 = arith.constant 17 : index
    %147 = memref.load %arg1[%c17] : memref<27xf32, #tpu.memory_space<smem>>
    %148 = vector.broadcast %147 : f32 to vector<1x3x256xf32>
    %149 = arith.mulf %148, %142 : vector<1x3x256xf32>
    %150 = arith.addf %132, %149 : vector<1x3x256xf32>
    %c26 = arith.constant 26 : index
    %151 = memref.load %arg1[%c26] : memref<27xf32, #tpu.memory_space<smem>>
    %152 = vector.broadcast %151 : f32 to vector<1x3x256xf32>
    %153 = arith.mulf %152, %142 : vector<1x3x256xf32>
    %154 = arith.addf %136, %153 : vector<1x3x256xf32>
    %cst_20 = arith.constant 0.000000e+00 : f32
    %155 = vector.broadcast %cst_20 : f32 to vector<1x1x256xf32>
    %156 = vector.extract_strided_slice %146 {offsets = [0, 0, 0], sizes = [1, 2, 256], strides = [1, 1, 1]} : vector<1x3x256xf32> to vector<1x2x256xf32>
    %157 = tpu.concatenate %155, %156 in 1 : vector<1x1x256xf32>, vector<1x2x256xf32> -> vector<1x3x256xf32>
    %158 = arith.addf %150, %157 : vector<1x3x256xf32>
    %159 = vector.extract_strided_slice %154 {offsets = [0, 1, 0], sizes = [1, 2, 256], strides = [1, 1, 1]} : vector<1x3x256xf32> to vector<1x2x256xf32>
    %160 = tpu.concatenate %159, %155 in 1 : vector<1x2x256xf32>, vector<1x1x256xf32> -> vector<1x3x256xf32>
    %161 = arith.addf %158, %160 : vector<1x3x256xf32>
    %162 = arith.negf %161 : vector<1x3x256xf32>
    %163 = math.exp %162 : vector<1x3x256xf32>
    %cst_21 = arith.constant 1.000000e+00 : f32
    %164 = vector.broadcast %cst_21 : f32 to vector<1x3x256xf32>
    %165 = arith.addf %164, %163 : vector<1x3x256xf32>
    %166 = arith.divf %164, %165 : vector<1x3x256xf32>
    %cst_22 = arith.constant 1.000000e+00 : f32
    %167 = vector.broadcast %cst_22 : f32 to vector<1x3x256xf32>
    %168 = arith.addf %167, %166 : vector<1x3x256xf32>
    %169 = vector.shape_cast %168 : vector<1x3x256xf32> to vector<1x3x1x256xf32>
    %170 = vector.broadcast %169 : vector<1x3x1x256xf32> to vector<1x3x16x256xf32>
    %171 = arith.mulf %0, %170 : vector<1x3x16x256xf32>
    %c0_23 = arith.constant 0 : index
    %c0_24 = arith.constant 0 : index
    %c0_25 = arith.constant 0 : index
    %c0_26 = arith.constant 0 : index
    %172 = vector.load %arg4[%c0_23, %c0_24, %c0_25, %c0_26] : memref<1x3x16x256xf32, #tpu.memory_space<vmem>>, vector<1x3x16x256xf32>
    tpu.vector_store %arg4[%c0_23, %c0_24, %c0_25, %c0_26], %171 {strides = array<i32>} : memref<1x3x16x256xf32, #tpu.memory_space<vmem>>, vector<1x3x16x256xf32>,
    return
  }
  func.func @transform_0(%arg0: i32) -> i32 {
    %c0_i32 = arith.constant 0 : i32
    %c0_i32_0 = arith.constant 0 : i32
    return %c0_i32 : i32
  }
  func.func @transform_1(%arg0: i32) -> (i32, i32) {
    %c0_i32 = arith.constant 0 : i32
    %c0_i32_0 = arith.constant 0 : i32
    %c0_i32_1 = arith.constant 0 : i32
    return %c0_i32, %c0_i32_0 : i32, i32
  }
  func.func @transform_2(%arg0: i32) -> (i32, i32, i32, i32) {
    %c0_i32 = arith.constant 0 : i32
    %c0_i32_0 = arith.constant 0 : i32
    %c0_i32_1 = arith.constant 0 : i32
    %c0_i32_2 = arith.constant 0 : i32
    return %arg0, %c0_i32, %c0_i32_0, %c0_i32_1 : i32, i32, i32, i32
  }
  func.func @transform_3(%arg0: i32) -> (i32, i32, i32, i32) {
    %c0_i32 = arith.constant 0 : i32
    %c0_i32_0 = arith.constant 0 : i32
    %c0_i32_1 = arith.constant 0 : i32
    %c0_i32_2 = arith.constant 0 : i32
    return %arg0, %c0_i32, %c0_i32_0, %c0_i32_1 : i32, i32, i32, i32
  }
}

</mosaic_0001>

<llo_original>
// kernel: tpu_custom_call.1
$region0: #{tpu_custom_call.1}
  #allocation0 [shape = 'u32[]', space=smem, size = 0x4, offset = 0x4, fixed_abs, tag = 'smem constant byte address 0x4 - core index']
  #allocation1 [shape = 'u32[144,128]{1,0:T(1,128)}', space=vmem, size = 0x12000, scoped, tag = 'internal scratch']
  %s0 = inlined_call_operand.hbm [shape: f32[27], index: 0, kind: input, shape index: {}]
  %s1 = inlined_call_operand.hbm [shape: f32[9,256], index: 1, kind: input, shape index: {}]
  %s2 = inlined_call_operand.hbm [shape: f32[2,3,16,256], index: 2, kind: input, shape index: {}]
  %s3 = inlined_call_operand.hbm [shape: f32[2,3,16,256], index: 3, kind: output, shape index: {}]
  %s4 = sld [smem:[#allocation0]]
  $region57: #{tpu_custom_call.1} parent=0
    _
  %s6 = ssub.s32 1, %s4
  %s7 = scalar_select 0, %s6, %s4
  $region1: #{tpu_custom_call.1} parent=0
    #allocation2 [shape = 'u8[512]{0}', space=smem, size = 0x200, scoped, tag = 'input window, operand 0, single buffered']
    #allocation3 [shape = 's32[2]{0}', space=sflag, size = 0x8, scoped, tag = 'scoped memory for tpu_custom_call.1']
    #allocation4 [shape = 's32[2]{0}', space=sflag, size = 0x8, scoped, tag = 'scoped memory for tpu_custom_call.1']
    #allocation5 [shape = 's32[2]{0}', space=sflag, size = 0x8, scoped, tag = 'scoped memory for tpu_custom_call.1']
    #allocation6 [shape = 'u8[16384]{0}', space=vmem, size = 0x4000, scoped, tag = 'input window, operand 1, single buffered']
    #allocation7 [shape = 'u8[98304]{0}', space=vmem, size = 0x18000, scoped, tag = 'input window, operand 2']
    #allocation8 [shape = 's32[2]{0}', space=sflag, size = 0x8, scoped, tag = 'scoped memory for tpu_custom_call.1']
    #allocation9 [shape = 'u8[98304]{0}', space=vmem, size = 0x18000, scoped, tag = 'output window, operand 0']
    %8 = vsyncpa [#allocation5], 0
    %9 = vsyncpa [#allocation3], 0
    %10 = vsyncpa [#allocation8], 0
    %s11 = scalar_lea.sflag [#allocation8], 1
    %12 = vsyncpa %s11, 0
    %13 = vsyncpa [#allocation4], 0
    %s14 = scalar_lea.sflag [#allocation4], 1
    %15 = vsyncpa %s14, 0
    loop: start=0, step=1, limit=4
    $region2: #{tpu_custom_call.1} parent=1 // loop_pre_header
      _
    $region3: #{tpu_custom_call.1} parent=1 // loop_header
      %s17 = sphi 0, %s21
      %p18 = scmp.ge.s32.totalorder %s17, 4
      %s25 = sphi 0, %s25
      %s27 = sphi 0, %s25
      %s28 = sphi 0, %s27
      %s42 = sphi 0, %s28
      %s46 = sphi 0, %s46
      %s48 = sphi 0, %s46
      %s49 = sphi 0, %s48
      %s63 = sphi 0, %s49
      %s69 = sphi 0, %s71
      %s72 = sphi 0, %s69
      %s73 = sphi 0, %s72
      %s89 = sphi 0, %s73
      %s95 = sphi 0, %s97
      %s98 = sphi 0, %s95
      %s99 = sphi 0, %s98
      %s115 = sphi 0, %s99
    $region4: #{tpu_custom_call.1} parent=1 // loop_header_branch
      %20 = sbr.rel (%p18) target = $region8
    $region5: #{tpu_custom_call.1} parent=1 // loop_body
      %s22 = ssub.s32 %s17, 1
      %s23 = ssub.s32 %s17, 2
      %s24 = sadd.s32 %s17, 1
      %s26 = sadd.s32 %s25, 1
      %p29 = scmp.eq.s32.totalorder %s17, 1
      %p30 = scmp.ne.s32.totalorder %s25, %s27
      %p31 = scmp.eq.s32.totalorder %s17, 0
      %p32 = por %p30, %p31
      %p33 = scmp.ne.s32.totalorder %s25, %s27
      %p34 = scmp.eq.s32.totalorder %s22, 1
      %p35 = por %p33, %p34
      %p36 = scmp.ne.s32.totalorder %s27, %s28
      %p37 = scmp.eq.s32.totalorder %s22, 0
      %p38 = por %p36, %p37
      %p39 = scmp.ne.s32.totalorder %s27, %s28
      %p40 = scmp.eq.s32.totalorder %s23, 1
      %p41 = por %p39, %p40
      %p43 = scmp.ne.s32.totalorder %s28, %s42
      %p44 = scmp.eq.s32.totalorder %s23, 0
      %p45 = por %p43, %p44
      %s47 = sadd.s32 %s46, 1
      %p50 = scmp.eq.s32.totalorder %s17, 1
      %p51 = scmp.ne.s32.totalorder %s46, %s48
      %p52 = scmp.eq.s32.totalorder %s17, 0
      %p53 = por %p51, %p52
      %p54 = scmp.ne.s32.totalorder %s46, %s48
      %p55 = scmp.eq.s32.totalorder %s22, 1
      %p56 = por %p54, %p55
      %p57 = scmp.ne.s32.totalorder %s48, %s49
      %p58 = scmp.eq.s32.totalorder %s22, 0
      %p59 = por %p57, %p58
      %p60 = scmp.ne.s32.totalorder %s48, %s49
      %p61 = scmp.eq.s32.totalorder %s23, 1
      %p62 = por %p60, %p61
      %p64 = scmp.ne.s32.totalorder %s49, %s63
      %p65 = scmp.eq.s32.totalorder %s23, 0
      %p66 = por %p64, %p65
      %s67 = ssub.s32 %s17, %s24
      %p68 = scmp.eq.s32.totalorder %s67, 0
      %s70 = sadd.s32 %s69, 1
      %s71 = scalar_select %p68, %s69, %s70
      %p74 = pneg %p68
      %p75 = scmp.eq.s32.totalorder %s17, 1
      %p76 = por %p74, %p75
      %p77 = scmp.ne.s32.totalorder %s69, %s72
      %p78 = scmp.eq.s32.totalorder %s17, 0
      %p79 = por %p77, %p78
      %p80 = scmp.ne.s32.totalorder %s69, %s72
      %p81 = scmp.eq.s32.totalorder %s22, 1
      %p82 = por %p80, %p81
      %p83 = scmp.ne.s32.totalorder %s72, %s73
      %p84 = scmp.eq.s32.totalorder %s22, 0
      %p85 = por %p83, %p84
      %p86 = scmp.ne.s32.totalorder %s72, %s73
      %p87 = scmp.eq.s32.totalorder %s23, 1
      %p88 = por %p86, %p87
      %p90 = scmp.ne.s32.totalorder %s73, %s89
      %p91 = scmp.eq.s32.totalorder %s23, 0
      %p92 = por %p90, %p91
      %s93 = ssub.s32 %s17, %s24
      %p94 = scmp.eq.s32.totalorder %s93, 0
      %s96 = sadd.s32 %s95, 1
      %s97 = scalar_select %p94, %s95, %s96
      %p100 = pneg %p94
      %p101 = scmp.eq.s32.totalorder %s17, 1
      %p102 = por %p100, %p101
      %p103 = scmp.ne.s32.totalorder %s95, %s98
      %p104 = scmp.eq.s32.totalorder %s17, 0
      %p105 = por %p103, %p104
      %p106 = scmp.ne.s32.totalorder %s95, %s98
      %p107 = scmp.eq.s32.totalorder %s22, 1
      %p108 = por %p106, %p107
      %p109 = scmp.ne.s32.totalorder %s98, %s99
      %p110 = scmp.eq.s32.totalorder %s22, 0
      %p111 = por %p109, %p110
      %p112 = scmp.ne.s32.totalorder %s98, %s99
      %p113 = scmp.eq.s32.totalorder %s23, 1
      %p114 = por %p112, %p113
      %p116 = scmp.ne.s32.totalorder %s99, %s115
      %p117 = scmp.eq.s32.totalorder %s23, 0
      %p118 = por %p116, %p117
      %p119 = scmp.le.s32.totalorder 1, %s17
      %p120 = scmp.lt.s32.totalorder %s17, 3
      %p121 = pnand %p119, %p120
      %p122 = pneg %p121
      // Predicated region
      $region9: #{tpu_custom_call.1} parent=5 // pred_check
        _
      $region10: #{tpu_custom_call.1} parent=5 // pred_check_branch
        %124 = sbr.rel (%p121) target = $region12
      $region11: #{tpu_custom_call.1} parent=5 // pred_region
        %s125 = ssub.s32 %s17, 1
        // Predicated region
        $region13: #{tpu_custom_call.1} parent=11 // pred_check
          %p126 = pneg %p38
        $region14: #{tpu_custom_call.1} parent=11 // pred_check_branch
          %128 = sbr.rel (%p126) target = $region16
        $region15: #{tpu_custom_call.1} parent=11 // pred_region
          %s130 = ssub.s32 16, 16
          %131 = vsyncadd [#allocation5], %s130
          %134 = dma.hbm_to_smem %s0, 16, [#allocation2], [#allocation5]
        $region16: #{tpu_custom_call.1} parent=11 // pred_fallthru
          _
        // Predicated region
        $region17: #{tpu_custom_call.1} parent=11 // pred_check
          %p135 = pneg %p59
        $region18: #{tpu_custom_call.1} parent=11 // pred_check_branch
          %137 = sbr.rel (%p135) target = $region20
        $region19: #{tpu_custom_call.1} parent=11 // pred_region
          %s139 = ssub.s32 512, 512
          %140 = vsyncadd [#allocation3], %s139
          %s141 = sshll.u32 [#allocation6], 4
          %s142 = int_to_ptr.vmem [resolvable:$true] %s141
          %147 = dma.hbm_to_vmem [thread:$0]  %s1, 512, %s142, [#allocation3], 256, 256, 16
        $region20: #{tpu_custom_call.1} parent=11 // pred_fallthru
          _
      $region12: #{tpu_custom_call.1} parent=5 // pred_fallthru
        _
      %p148 = scmp.lt.s32.totalorder %s17, 2
      // Predicated region
      $region21: #{tpu_custom_call.1} parent=5 // pred_check
        %p149 = pneg %p148
      $region22: #{tpu_custom_call.1} parent=5 // pred_check_branch
        %151 = sbr.rel (%p149) target = $region24
      $region23: #{tpu_custom_call.1} parent=5 // pred_region
        // Predicated region
        $region25: #{tpu_custom_call.1} parent=23 // pred_check
          %p152 = pneg %p79
        $region26: #{tpu_custom_call.1} parent=23 // pred_check_branch
          %154 = sbr.rel (%p152) target = $region28
        $region27: #{tpu_custom_call.1} parent=23 // pred_region
          %s155 = sand.u32 %s69, 1
          %s156 = scalar_lea.sflag [#allocation8], %s155
          %s157 = sand.u32 %s69, 1
          %s158 = smul.addr %s157, 96
          %s159 = scalar_lea.vmem [#allocation7], %s158
          %s161 = ssub.s32 1536, 1536
          %162 = vsyncadd %s156, %s161
          %s163 = smul.addr %s17, 12
          %s164 = smul.addr %s163, 128
          %s165 = scalar_lea.hbm %s2, %s164
          %s166 = sshll.u32 %s159, 4
          %s167 = int_to_ptr.vmem [resolvable:$true] %s166
          %172 = dma.hbm_to_vmem [thread:$0]  %s165, 1536, %s167, %s156, 256, 256, 16
        $region28: #{tpu_custom_call.1} parent=23 // pred_fallthru
          _
      $region24: #{tpu_custom_call.1} parent=5 // pred_fallthru
        _
      %p173 = scmp.le.s32.totalorder 1, %s17
      %p174 = scmp.lt.s32.totalorder %s17, 3
      %p175 = pnand %p173, %p174
      %p176 = pneg %p175
      // Predicated region
      $region29: #{tpu_custom_call.1} parent=5 // pred_check
        _
      $region30: #{tpu_custom_call.1} parent=5 // pred_check_branch
        %178 = sbr.rel (%p175) target = $region32
      $region31: #{tpu_custom_call.1} parent=5 // pred_region
        %s179 = ssub.s32 %s17, 1
        // Predicated region
        $region33: #{tpu_custom_call.1} parent=31 // pred_check
          %p180 = pneg %p38
        $region34: #{tpu_custom_call.1} parent=31 // pred_check_branch
          %182 = sbr.rel (%p180) target = $region36
        $region35: #{tpu_custom_call.1} parent=31 // pred_region
          %183 = dma.done [#allocation5], 16
        $region36: #{tpu_custom_call.1} parent=31 // pred_fallthru
          _
        // Predicated region
        $region37: #{tpu_custom_call.1} parent=31 // pred_check
          %p184 = pneg %p59
        $region38: #{tpu_custom_call.1} parent=31 // pred_check_branch
          %186 = sbr.rel (%p184) target = $region40
        $region39: #{tpu_custom_call.1} parent=31 // pred_region
          %187 = dma.done [#allocation3], 512
        $region40: #{tpu_custom_call.1} parent=31 // pred_fallthru
          _
        %s188 = sand.u32 %s72, 1
        %s189 = scalar_lea.sflag [#allocation8], %s188
        %s190 = sand.u32 %s72, 1
        %s191 = smul.addr %s190, 96
        %s192 = scalar_lea.vmem [#allocation7], %s191
        // Predicated region
        $region41: #{tpu_custom_call.1} parent=31 // pred_check
          %p193 = pneg %p85
        $region42: #{tpu_custom_call.1} parent=31 // pred_check_branch
          %195 = sbr.rel (%p193) target = $region44
        $region43: #{tpu_custom_call.1} parent=31 // pred_region
          %196 = dma.done %s189, 1536
        $region44: #{tpu_custom_call.1} parent=31 // pred_fallthru
          _
        %197 = sfence
        %p198 = pneg %p38
        %p199 = pneg %p35
        %p200 = pneg %p59
        %p201 = pneg %p56
        %s202 = sand.u32 %s72, 1
        %s203 = scalar_lea.sflag [#allocation8], %s202
        %s204 = sand.u32 %s72, 1
        %s205 = smul.addr %s204, 96
        %s206 = scalar_lea.vmem [#allocation7], %s205
        %p207 = pneg %p85
        %p208 = pneg %p82
        %p209 = pneg %p111
        %p210 = pneg %p108
        %s211 = sand.u32 %s98, 1
        %s212 = scalar_lea.sflag [#allocation4], %s211
        %s213 = sand.u32 %s98, 1
        %s214 = smul.addr %s213, 96
        %s215 = scalar_lea.vmem [#allocation9], %s214
        %v216 = vld [vmem:[%s192] sm:$0xff]
        %v217 = vld [vmem:[%s192 + $0x8] sm:$0xff]
        %v218 = vld [vmem:[%s192 + $0x10] sm:$0xff]
        %v219 = vld [vmem:[%s192 + $0x18] sm:$0xff]
        %v220 = vld [vmem:[%s192 + $0x20] sm:$0xff]
        %v221 = vld [vmem:[%s192 + $0x28] sm:$0xff]
        %v222 = vld [vmem:[%s192 + $0x30] sm:$0xff]
        %v223 = vld [vmem:[%s192 + $0x38] sm:$0xff]
        %v224 = vld [vmem:[%s192 + $0x40] sm:$0xff]
        %v225 = vld [vmem:[%s192 + $0x48] sm:$0xff]
        %v226 = vld [vmem:[%s192 + $0x50] sm:$0xff]
        %v227 = vld [vmem:[%s192 + $0x58] sm:$0xff]
        %v228 = vadd.f32 %v216, %v218
        %v229 = vrot.slane %v228, 4
        %v230 = vadd.f32 %v228, %v229
        %v231 = vrot.slane %v230, 2
        %v232 = vadd.f32 %v230, %v231
        %v233 = vrot.slane %v232, 1
        %v234 = vadd.f32 %v232, %v233
        %v235 = vadd.f32 %v217, %v219
        %v236 = vrot.slane %v235, 4
        %v237 = vadd.f32 %v235, %v236
        %v238 = vrot.slane %v237, 2
        %v239 = vadd.f32 %v237, %v238
        %v240 = vrot.slane %v239, 1
        %v241 = vadd.f32 %v239, %v240
        %v242 = vadd.f32 %v220, %v222
        %v243 = vrot.slane %v242, 4
        %v244 = vadd.f32 %v242, %v243
        %v245 = vrot.slane %v244, 2
        %v246 = vadd.f32 %v244, %v245
        %v247 = vrot.slane %v246, 1
        %v248 = vadd.f32 %v246, %v247
        %v249 = vadd.f32 %v221, %v223
        %v250 = vrot.slane %v249, 4
        %v251 = vadd.f32 %v249, %v250
        %v252 = vrot.slane %v251, 2
        %v253 = vadd.f32 %v251, %v252
        %v254 = vrot.slane %v253, 1
        %v255 = vadd.f32 %v253, %v254
        %v256 = vadd.f32 %v224, %v226
        %v257 = vrot.slane %v256, 4
        %v258 = vadd.f32 %v256, %v257
        %v259 = vrot.slane %v258, 2
        %v260 = vadd.f32 %v258, %v259
        %v261 = vrot.slane %v260, 1
        %v262 = vadd.f32 %v260, %v261
        %v263 = vadd.f32 %v225, %v227
        %v264 = vrot.slane %v263, 4
        %v265 = vadd.f32 %v263, %v264
        %v266 = vrot.slane %v265, 2
        %v267 = vadd.f32 %v265, %v266
        %v268 = vrot.slane %v267, 1
        %v269 = vadd.f32 %v267, %v268
        %vm276 = vcmask 1041409
        %v277 = vsel %vm276, %v248, %v234
        %vm278 = vcmask 1042434
        %v279 = vsel %vm278, %v262, %v277
        %v280 = vsel %vm276, %v255, %v241
        %v281 = vsel %vm278, %v269, %v280
        %284 = vrot.lane.b32.xlu0 %v279, 17
        %v285 = vpop.permute.xlu0 %284
        %286 = vrot.lane.b32.xlu0 %v281, 17
        %v287 = vpop.permute.xlu0 %286
        %v288 = vlaneseq
        %v289 = vand.u32 %v288, 127
        %vm290 = vcmp.lt.s32.totalorder %v289, 17
        %v291 = vsel %vm290, %v285, %v287
        %v292 = vsel %vm290, %v287, %v285
        %v293 = vld [vmem:[#allocation6] ss:$8 sm:$0x3]
        %v295 = vlaneseq
        %v296 = vshrl.u32 %v295, 7
        %v297 = vsub.s32 0, %v296
        %v298 = vrot.slane %v293, %v297
        %v299 = vlaneseq
        %v300 = vshrl.u32 %v299, 7
        %v301 = vsub.s32 1, %v300
        %v302 = vrot.slane %v293, %v301
        %v305 = vmul.f32 %v292, %v298
        %v306 = vmul.f32 %v291, %v302
        %s307 = sld [smem:[#allocation2]]
        %v308 = vstv %s307
        %v309 = vmul.f32 %v308, %v305
        %v310 = vmul.f32 %v308, %v306
        %s311 = sld [smem:[#allocation2 + $0x9]]
        %v312 = vstv %s311
        %v313 = vmul.f32 %v312, %v305
        %v314 = vmul.f32 %v312, %v306
        %s315 = sld [smem:[#allocation2 + $0x12]]
        %v316 = vstv %s315
        %v317 = vmul.f32 %v316, %v305
        %v318 = vmul.f32 %v316, %v306
        %319 = vrot.lane.b32.xlu0 %v279, 16
        %v320 = vpop.permute.xlu0 %319
        %321 = vrot.lane.b32.xlu0 %v281, 16
        %v322 = vpop.permute.xlu0 %321
        %vm323 = vcmp.lt.s32.totalorder %v289, 16
        %v324 = vsel %vm323, %v320, %v322
        %v325 = vsel %vm323, %v322, %v320
        %s326 = scalar_lea.vmem [#allocation6], 1
        %v327 = vld [vmem:[%s326] ss:$8 sm:$0x3]
        %v329 = vlaneseq
        %v330 = vshrl.u32 %v329, 7
        %v331 = vsub.s32 0, %v330
        %v332 = vrot.slane %v327, %v331
        %v333 = vlaneseq
        %v334 = vshrl.u32 %v333, 7
        %v335 = vsub.s32 1, %v334
        %v336 = vrot.slane %v327, %v335
        %v339 = vmul.f32 %v325, %v332
        %v340 = vmul.f32 %v324, %v336
        %s341 = sld [smem:[#allocation2 + $0x1]]
        %v342 = vstv %s341
        %v343 = vmul.f32 %v342, %v339
        %v344 = vmul.f32 %v342, %v340
        %v345 = vadd.f32 %v309, %v343
        %v346 = vadd.f32 %v310, %v344
        %s347 = sld [smem:[#allocation2 + $0xa]]
        %v348 = vstv %s347
        %v349 = vmul.f32 %v348, %v339
        %v350 = vmul.f32 %v348, %v340
        %v351 = vadd.f32 %v313, %v349
        %v352 = vadd.f32 %v314, %v350
        %s353 = sld [smem:[#allocation2 + $0x13]]
        %v354 = vstv %s353
        %v355 = vmul.f32 %v354, %v339
        %v356 = vmul.f32 %v354, %v340
        %v357 = vadd.f32 %v317, %v355
        %v358 = vadd.f32 %v318, %v356
        %359 = vrot.lane.b32.xlu0 %v279, 15
        %v360 = vpop.permute.xlu0 %359
        %361 = vrot.lane.b32.xlu0 %v281, 15
        %v362 = vpop.permute.xlu0 %361
        %vm363 = vcmp.lt.s32.totalorder %v289, 15
        %v364 = vsel %vm363, %v360, %v362
        %v365 = vsel %vm363, %v362, %v360
        %s366 = scalar_lea.vmem [#allocation6], 2
        %v367 = vld [vmem:[%s366] ss:$8 sm:$0x3]
        %v369 = vlaneseq
        %v370 = vshrl.u32 %v369, 7
        %v371 = vsub.s32 0, %v370
        %v372 = vrot.slane %v367, %v371
        %v373 = vlaneseq
        %v374 = vshrl.u32 %v373, 7
        %v375 = vsub.s32 1, %v374
        %v376 = vrot.slane %v367, %v375
        %v379 = vmul.f32 %v365, %v372
        %v380 = vmul.f32 %v364, %v376
        %s381 = sld [smem:[#allocation2 + $0x2]]
        %v382 = vstv %s381
        %v383 = vmul.f32 %v382, %v379
        %v384 = vmul.f32 %v382, %v380
        %v385 = vadd.f32 %v345, %v383
        %v386 = vadd.f32 %v346, %v384
        %s387 = sld [smem:[#allocation2 + $0xb]]
        %v388 = vstv %s387
        %v389 = vmul.f32 %v388, %v379
        %v390 = vmul.f32 %v388, %v380
        %v391 = vadd.f32 %v351, %v389
        %v392 = vadd.f32 %v352, %v390
        %s393 = sld [smem:[#allocation2 + $0x14]]
        %v394 = vstv %s393
        %v395 = vmul.f32 %v394, %v379
        %v396 = vmul.f32 %v394, %v380
        %v397 = vadd.f32 %v357, %v395
        %v398 = vadd.f32 %v358, %v396
        %399 = vrot.lane.b32.xlu0 %v279, 1
        %v400 = vpop.permute.xlu0 %399
        %401 = vrot.lane.b32.xlu0 %v281, 1
        %v402 = vpop.permute.xlu0 %401
        %vm403 = vcmp.lt.s32.totalorder %v289, 1
        %v404 = vsel %vm403, %v400, %v402
        %v405 = vsel %vm403, %v402, %v400
        %s406 = scalar_lea.vmem [#allocation6], 3
        %v407 = vld [vmem:[%s406] ss:$8 sm:$0x3]
        %v409 = vlaneseq
        %v410 = vshrl.u32 %v409, 7
        %v411 = vsub.s32 0, %v410
        %v412 = vrot.slane %v407, %v411
        %v413 = vlaneseq
        %v414 = vshrl.u32 %v413, 7
        %v415 = vsub.s32 1, %v414
        %v416 = vrot.slane %v407, %v415
        %v419 = vmul.f32 %v405, %v412
        %v420 = vmul.f32 %v404, %v416
        %s421 = sld [smem:[#allocation2 + $0x3]]
        %v422 = vstv %s421
        %v423 = vmul.f32 %v422, %v419
        %v424 = vmul.f32 %v422, %v420
        %v425 = vadd.f32 %v385, %v423
        %v426 = vadd.f32 %v386, %v424
        %s427 = sld [smem:[#allocation2 + $0xc]]
        %v428 = vstv %s427
        %v429 = vmul.f32 %v428, %v419
        %v430 = vmul.f32 %v428, %v420
        %v431 = vadd.f32 %v391, %v429
        %v432 = vadd.f32 %v392, %v430
        %s433 = sld [smem:[#allocation2 + $0x15]]
        %v434 = vstv %s433
        %v435 = vmul.f32 %v434, %v419
        %v436 = vmul.f32 %v434, %v420
        %v437 = vadd.f32 %v397, %v435
        %v438 = vadd.f32 %v398, %v436
        %s439 = sld [smem:[#allocation2 + $0x4]]
        %v440 = vstv %s439
        %v441 = vmul.f32 %v440, %v234
        %v442 = vmul.f32 %v440, %v241
        %v443 = vmul.f32 %v440, %v248
        %v444 = vmul.f32 %v440, %v255
        %v445 = vmul.f32 %v440, %v262
        %v446 = vmul.f32 %v440, %v269
        %v453 = vsel %vm276, %v443, %v441
        %v454 = vsel %vm278, %v445, %v453
        %v455 = vsel %vm276, %v444, %v442
        %v456 = vsel %vm278, %v446, %v455
        %v459 = vadd.f32 %v425, %v454
        %v460 = vadd.f32 %v426, %v456
        %s461 = sld [smem:[#allocation2 + $0xd]]
        %v462 = vstv %s461
        %v463 = vmul.f32 %v462, %v234
        %v464 = vmul.f32 %v462, %v241
        %v465 = vmul.f32 %v462, %v248
        %v466 = vmul.f32 %v462, %v255
        %v467 = vmul.f32 %v462, %v262
        %v468 = vmul.f32 %v462, %v269
        %v475 = vsel %vm276, %v465, %v463
        %v476 = vsel %vm278, %v467, %v475
        %v477 = vsel %vm276, %v466, %v464
        %v478 = vsel %vm278, %v468, %v477
        %v481 = vadd.f32 %v431, %v476
        %v482 = vadd.f32 %v432, %v478
        %s483 = sld [smem:[#allocation2 + $0x16]]
        %v484 = vstv %s483
        %v485 = vmul.f32 %v484, %v234
        %v486 = vmul.f32 %v484, %v241
        %v487 = vmul.f32 %v484, %v248
        %v488 = vmul.f32 %v484, %v255
        %v489 = vmul.f32 %v484, %v262
        %v490 = vmul.f32 %v484, %v269
        %v497 = vsel %vm276, %v487, %v485
        %v498 = vsel %vm278, %v489, %v497
        %v499 = vsel %vm276, %v488, %v486
        %v500 = vsel %vm278, %v490, %v499
        %v503 = vadd.f32 %v437, %v498
        %v504 = vadd.f32 %v438, %v500
        %505 = vrot.lane.b32.xlu0 %v279, 127
        %v506 = vpop.permute.xlu0 %505
        %507 = vrot.lane.b32.xlu0 %v281, 127
        %v508 = vpop.permute.xlu0 %507
        %vm509 = vcmp.lt.s32.totalorder %v289, 127
        %v510 = vsel %vm509, %v506, %v508
        %v511 = vsel %vm509, %v508, %v506
        %s512 = scalar_lea.vmem [#allocation6], 5
        %v513 = vld [vmem:[%s512] ss:$8 sm:$0x3]
        %v515 = vlaneseq
        %v516 = vshrl.u32 %v515, 7
        %v517 = vsub.s32 0, %v516
        %v518 = vrot.slane %v513, %v517
        %v519 = vlaneseq
        %v520 = vshrl.u32 %v519, 7
        %v521 = vsub.s32 1, %v520
        %v522 = vrot.slane %v513, %v521
        %v525 = vmul.f32 %v510, %v518
        %v526 = vmul.f32 %v511, %v522
        %s527 = sld [smem:[#allocation2 + $0x5]]
        %v528 = vstv %s527
        %v529 = vmul.f32 %v528, %v525
        %v530 = vmul.f32 %v528, %v526
        %v531 = vadd.f32 %v459, %v529
        %v532 = vadd.f32 %v460, %v530
        %s533 = sld [smem:[#allocation2 + $0xe]]
        %v534 = vstv %s533
        %v535 = vmul.f32 %v534, %v525
        %v536 = vmul.f32 %v534, %v526
        %v537 = vadd.f32 %v481, %v535
        %v538 = vadd.f32 %v482, %v536
        %s539 = sld [smem:[#allocation2 + $0x17]]
        %v540 = vstv %s539
        %v541 = vmul.f32 %v540, %v525
        %v542 = vmul.f32 %v540, %v526
        %v543 = vadd.f32 %v503, %v541
        %v544 = vadd.f32 %v504, %v542
        %545 = vrot.lane.b32.xlu0 %v279, 113
        %v546 = vpop.permute.xlu0 %545
        %547 = vrot.lane.b32.xlu0 %v281, 113
        %v548 = vpop.permute.xlu0 %547
        %vm549 = vcmp.lt.s32.totalorder %v289, 113
        %v550 = vsel %vm549, %v546, %v548
        %v551 = vsel %vm549, %v548, %v546
        %s552 = scalar_lea.vmem [#allocation6], 6
        %v553 = vld [vmem:[%s552] ss:$8 sm:$0x3]
        %v555 = vlaneseq
        %v556 = vshrl.u32 %v555, 7
        %v557 = vsub.s32 0, %v556
        %v558 = vrot.slane %v553, %v557
        %v559 = vlaneseq
        %v560 = vshrl.u32 %v559, 7
        %v561 = vsub.s32 1, %v560
        %v562 = vrot.slane %v553, %v561
        %v565 = vmul.f32 %v550, %v558
        %v566 = vmul.f32 %v551, %v562
        %s567 = sld [smem:[#allocation2 + $0x6]]
        %v568 = vstv %s567
        %v569 = vmul.f32 %v568, %v565
        %v570 = vmul.f32 %v568, %v566
        %v571 = vadd.f32 %v531, %v569
        %v572 = vadd.f32 %v532, %v570
        %s573 = sld [smem:[#allocation2 + $0xf]]
        %v574 = vstv %s573
        %v575 = vmul.f32 %v574, %v565
        %v576 = vmul.f32 %v574, %v566
        %v577 = vadd.f32 %v537, %v575
        %v578 = vadd.f32 %v538, %v576
        %s579 = sld [smem:[#allocation2 + $0x18]]
        %v580 = vstv %s579
        %v581 = vmul.f32 %v580, %v565
        %v582 = vmul.f32 %v580, %v566
        %v583 = vadd.f32 %v543, %v581
        %v584 = vadd.f32 %v544, %v582
        %585 = vrot.lane.b32.xlu0 %v279, 112
        %v586 = vpop.permute.xlu0 %585
        %587 = vrot.lane.b32.xlu0 %v281, 112
        %v588 = vpop.permute.xlu0 %587
        %vm589 = vcmp.lt.s32.totalorder %v289, 112
        %v590 = vsel %vm589, %v586, %v588
        %v591 = vsel %vm589, %v588, %v586
        %s592 = scalar_lea.vmem [#allocation6], 7
        %v593 = vld [vmem:[%s592] ss:$8 sm:$0x3]
        %v595 = vlaneseq
        %v596 = vshrl.u32 %v595, 7
        %v597 = vsub.s32 0, %v596
        %v598 = vrot.slane %v593, %v597
        %v599 = vlaneseq
        %v600 = vshrl.u32 %v599, 7
        %v601 = vsub.s32 1, %v600
        %v602 = vrot.slane %v593, %v601
        %v605 = vmul.f32 %v590, %v598
        %v606 = vmul.f32 %v591, %v602
        %s607 = sld [smem:[#allocation2 + $0x7]]
        %v608 = vstv %s607
        %v609 = vmul.f32 %v608, %v605
        %v610 = vmul.f32 %v608, %v606
        %v611 = vadd.f32 %v571, %v609
        %v612 = vadd.f32 %v572, %v610
        %s613 = sld [smem:[#allocation2 + $0x10]]
        %v614 = vstv %s613
        %v615 = vmul.f32 %v614, %v605
        %v616 = vmul.f32 %v614, %v606
        %v617 = vadd.f32 %v577, %v615
        %v618 = vadd.f32 %v578, %v616
        %s619 = sld [smem:[#allocation2 + $0x19]]
        %v620 = vstv %s619
        %v621 = vmul.f32 %v620, %v605
        %v622 = vmul.f32 %v620, %v606
        %v623 = vadd.f32 %v583, %v621
        %v624 = vadd.f32 %v584, %v622
        %625 = vrot.lane.b32.xlu0 %v279, 111
        %v626 = vpop.permute.xlu0 %625
        %627 = vrot.lane.b32.xlu0 %v281, 111
        %v628 = vpop.permute.xlu0 %627
        %vm629 = vcmp.lt.s32.totalorder %v289, 111
        %v630 = vsel %vm629, %v626, %v628
        %v631 = vsel %vm629, %v628, %v626
        %s632 = scalar_lea.vmem [#allocation6], 16
        %v633 = vld [vmem:[%s632] ss:$8 sm:$0x3]
        %v635 = vlaneseq
        %v636 = vshrl.u32 %v635, 7
        %v637 = vsub.s32 0, %v636
        %v638 = vrot.slane %v633, %v637
        %v639 = vlaneseq
        %v640 = vshrl.u32 %v639, 7
        %v641 = vsub.s32 1, %v640
        %v642 = vrot.slane %v633, %v641
        %v645 = vmul.f32 %v630, %v638
        %v646 = vmul.f32 %v631, %v642
        %s647 = sld [smem:[#allocation2 + $0x8]]
        %v648 = vstv %s647
        %v649 = vmul.f32 %v648, %v645
        %v650 = vmul.f32 %v648, %v646
        %v651 = vadd.f32 %v611, %v649
        %v652 = vadd.f32 %v612, %v650
        %s653 = sld [smem:[#allocation2 + $0x11]]
        %v654 = vstv %s653
        %v655 = vmul.f32 %v654, %v645
        %v656 = vmul.f32 %v654, %v646
        %v657 = vadd.f32 %v617, %v655
        %v658 = vadd.f32 %v618, %v656
        %s659 = sld [smem:[#allocation2 + $0x1a]]
        %v660 = vstv %s659
        %v661 = vmul.f32 %v660, %v645
        %v662 = vmul.f32 %v660, %v646
        %v663 = vadd.f32 %v623, %v661
        %v664 = vadd.f32 %v624, %v662
        %v667 = vrot.slane %v651, 7
        %v668 = vrot.slane %v652, 7
        %vm671 = vcmask 1040384
        %v672 = vsel %vm671, 0.0, %v667
        %v673 = vsel %vm671, 0.0, %v668
        %v674 = vadd.f32 %v657, %v672
        %v675 = vadd.f32 %v658, %v673
        %v678 = vrot.slane %v663, 1
        %v679 = vrot.slane %v664, 1
        %vm682 = vcmask 1041408
        %v683 = vsel %vm682, %v678, 0.0
        %v684 = vsel %vm682, %v679, 0.0
        %v685 = vadd.f32 %v674, %v683
        %v686 = vadd.f32 %v675, %v684
        %v687 = vxor.u32 %v685, 2147483648
        %v688 = vxor.u32 %v686, 2147483648
        %v689 = vmul.f32 %v687, 1.442695
        %v690 = vpow.pop %v689
        %v691 = vmul.f32 %v688, 1.442695
        %v692 = vpow.pop %v691
        %v693 = vadd.f32 %v690, 1.0
        %v694 = vadd.f32 %v692, 1.0
        %v695 = vrcp.pop %v693
        %v696 = vmul.f32 1.0, %v695
        %v697 = vrcp.pop %v694
        %v698 = vmul.f32 1.0, %v697
        %v699 = vadd.f32 %v696, 1.0
        %v700 = vadd.f32 %v698, 1.0
        %v703 = vcombine.low %v699, %v700
        %v705 = vunpack.c.l.s4 1966171168
        %v706 = vunpack.c.0.s8 %v705
        %v707 = vlaneseq
        %v708 = vshrl.u32 %v707, 7
        %v709 = vsub.s32 %v706, %v708
        %v710 = vrot.slane %v703, %v709
        %v711 = vcombine.high %v710, %v710
        %v713 = vunpack.c.l.s4 1966171168
        %v714 = vunpack.c.0.s8 %v713
        %v715 = vlaneseq
        %v716 = vshrl.u32 %v715, 7
        %v717 = vsub.s32 %v714, %v716
        %v718 = vrot.slane %v710, %v717
        %v720 = vunpack.c.l.s4 1966171168
        %v721 = vunpack.c.0.s8 %v720
        %v722 = vlaneseq
        %v723 = vshrl.u32 %v722, 7
        %v724 = vsub.s32 %v721, %v723
        %v725 = vrot.slane %v711, %v724
        %v726 = vcombine.high %v718, %v718
        %v727 = vlaneseq
        %v728 = vshrl.u32 %v727, 7
        %v729 = vsub.s32 0, %v728
        %v730 = vrot.slane %v718, %v729
        %v731 = vlaneseq
        %v732 = vshrl.u32 %v731, 7
        %v733 = vsub.s32 1, %v732
        %v734 = vrot.slane %v718, %v733
        %v735 = vlaneseq
        %v736 = vshrl.u32 %v735, 7
        %v737 = vsub.s32 0, %v736
        %v738 = vrot.slane %v725, %v737
        %v739 = vlaneseq
        %v740 = vshrl.u32 %v739, 7
        %v741 = vsub.s32 1, %v740
        %v742 = vrot.slane %v725, %v741
        %v743 = vlaneseq
        %v744 = vshrl.u32 %v743, 7
        %v745 = vsub.s32 0, %v744
        %v746 = vrot.slane %v726, %v745
        %v747 = vlaneseq
        %v748 = vshrl.u32 %v747, 7
        %v749 = vsub.s32 1, %v748
        %v750 = vrot.slane %v726, %v749
        %v757 = vmul.f32 %v216, %v730
        %v758 = vmul.f32 %v217, %v734
        %v759 = vmul.f32 %v218, %v730
        %v760 = vmul.f32 %v219, %v734
        %v761 = vmul.f32 %v220, %v738
        %v762 = vmul.f32 %v221, %v742
        %v763 = vmul.f32 %v222, %v738
        %v764 = vmul.f32 %v223, %v742
        %v765 = vmul.f32 %v224, %v746
        %v766 = vmul.f32 %v225, %v750
        %v767 = vmul.f32 %v226, %v746
        %v768 = vmul.f32 %v227, %v750
        %769 = vst [vmem:[%s215] sm:$0xff] %v757
        %770 = vst [vmem:[%s215 + $0x8] sm:$0xff] %v758
        %771 = vst [vmem:[%s215 + $0x10] sm:$0xff] %v759
        %772 = vst [vmem:[%s215 + $0x18] sm:$0xff] %v760
        %773 = vst [vmem:[%s215 + $0x20] sm:$0xff] %v761
        %774 = vst [vmem:[%s215 + $0x28] sm:$0xff] %v762
        %775 = vst [vmem:[%s215 + $0x30] sm:$0xff] %v763
        %776 = vst [vmem:[%s215 + $0x38] sm:$0xff] %v764
        %777 = vst [vmem:[%s215 + $0x40] sm:$0xff] %v765
        %778 = vst [vmem:[%s215 + $0x48] sm:$0xff] %v766
        %779 = vst [vmem:[%s215 + $0x50] sm:$0xff] %v767
        %780 = vst [vmem:[%s215 + $0x58] sm:$0xff] %v768
        %s781 = sand.u32 %s98, 1
        %s782 = scalar_lea.sflag [#allocation4], %s781
        %s783 = sand.u32 %s98, 1
        %s784 = smul.addr %s783, 96
        %s785 = scalar_lea.vmem [#allocation9], %s784
        // Predicated region
        $region45: #{tpu_custom_call.1} parent=31 // pred_check
          %p786 = pneg %p108
        $region46: #{tpu_custom_call.1} parent=31 // pred_check_branch
          %788 = sbr.rel (%p786) target = $region48
        $region47: #{tpu_custom_call.1} parent=31 // pred_region
          %s790 = ssub.s32 1536, 1536
          %791 = vsyncadd %s782, %s790
          %s792 = smul.addr %s22, 12
          %s793 = smul.addr %s792, 128
          %s794 = scalar_lea.hbm %s3, %s793
          %s795 = sshll.u32 %s785, 4
          %s796 = int_to_ptr.vmem [resolvable:$true] %s795
          %801 = dma.vmem_to_hbm [thread:$0]  %s796, 1536, %s794, %s782, 256, 256, 16
        $region48: #{tpu_custom_call.1} parent=31 // pred_fallthru
          _
      $region32: #{tpu_custom_call.1} parent=5 // pred_fallthru
        _
      %p802 = scmp.le.s32.totalorder 2, %s17
      // Predicated region
      $region49: #{tpu_custom_call.1} parent=5 // pred_check
        %p803 = pneg %p802
      $region50: #{tpu_custom_call.1} parent=5 // pred_check_branch
        %805 = sbr.rel (%p803) target = $region52
      $region51: #{tpu_custom_call.1} parent=5 // pred_region
        %s806 = ssub.s32 %s17, 2
        // Predicated region
        $region53: #{tpu_custom_call.1} parent=51 // pred_check
          %p807 = pneg %p114
        $region54: #{tpu_custom_call.1} parent=51 // pred_check_branch
          %809 = sbr.rel (%p807) target = $region56
        $region55: #{tpu_custom_call.1} parent=51 // pred_region
          %s810 = sand.u32 %s99, 1
          %s811 = scalar_lea.sflag [#allocation4], %s810
          %s812 = sand.u32 %s99, 1
          %s813 = smul.addr %s812, 96
          %s814 = scalar_lea.vmem [#allocation9], %s813
          %815 = dma.done %s811, 1536
        $region56: #{tpu_custom_call.1} parent=51 // pred_fallthru
          _
      $region52: #{tpu_custom_call.1} parent=5 // pred_fallthru
        _
    $region6: #{tpu_custom_call.1} parent=1 // loop_footer
      %s21 = sadd.s32 1, %s17
    $region7: #{tpu_custom_call.1} parent=1 // loop_footer_branch
      %16 = sbr.rel target = $region3
    $region8: #{tpu_custom_call.1} parent=1 // loop_exit
      _
    %816 = vsyncpa [#allocation3], 1
    %s817 = scalar_lea.sflag [#allocation3], 1
    %818 = vsyncpa %s817, 1
    %819 = vsyncpa [#allocation8], 1
    %s820 = scalar_lea.sflag [#allocation8], 1
    %821 = vsyncpa %s820, 1
    %822 = vsyncpa [#allocation4], 1
    %s823 = scalar_lea.sflag [#allocation4], 1
    %824 = vsyncpa %s823, 1
    %825 = vsyncpa [#allocation5], 1
    %s826 = scalar_lea.sflag [#allocation5], 1
    %827 = vsyncpa %s826, 1

</llo_original>
